<compile_context>
chip_gen: v6e
topology: v6e:2x2x1
jax: 0.10.0
libtpu: 0.0.40
codegen_flags: <defaults>
</compile_context>

<pallas_src>
import functools

import jax
import jax.numpy as jnp
from jax.experimental import pallas as pl
from jax.experimental.pallas import tpu as pltpu


def _cosface_kernel(labels_ref, logits_ref, out_ref, *, s, m, block_cols):
    """Elementwise CosFace margin on a (tm, tc) logits tile."""
    j = pl.program_id(1)                                    # column-tile index
    logits = logits_ref[...]                                # (tm, tc)
    # Shift labels into this tile's local column frame: (tm, 1) int32.
    labels_local = labels_ref[...] - j * block_cols
    tm, tc = logits.shape
    col_iota = jax.lax.broadcasted_iota(jnp.int32, (1, tc), 1)
    # Negative labels (-1 == ignore) or labels outside this tile never match.
    onehot = labels_local == col_iota                       # broadcast (tm, tc)
    out = jnp.where(onehot, logits - m, logits) * s
    out_ref[...] = out.astype(out_ref.dtype)


def _device_defaults():
    """(tile_target_bytes, vmem_limit_bytes, tensorcores_per_chip)."""
    kind = ""
    try:
        kind = jax.devices()[0].device_kind.lower()
    except Exception:
        pass
    if "v7" in kind:
        # v7x: ~3.2 TB/s HBM, 64 MiB VMEM/TC, 2 TCs.  Bigger tiles amortize
        # the fixed per-step overhead; 8 MiB double-buffered in+out = 32 MiB.
        return (8 << 20), (48 << 20), 2
    # v5e / v6e (and fallback): 4 MiB tiles are already >96% overhead-free,
    # and 32 MiB keeps the pipeline fully double-buffered on v5e.
    return (4 << 20), (32 << 20), 1


def cosface(logits, labels, *, s=64.0, m=0.4,
            block_rows=None, block_cols=None,
            vmem_limit_bytes=None):
    """Pallas implementation of CosFace.forward.

    logits: (B, C) float, labels: (B,) int (-1 == ignore row).
    Returns logits with the margin applied at the target class, scaled by s.
    Labels outside [0, C) behave like -1 (no margin), matching a
    model-parallel shard that does not own the true class.

    For best performance, jit the caller with `donate_argnums` on logits so
    the in-place alias (input_output_aliases) avoids a defensive copy.
    """
    B, C = logits.shape
    dtype = jnp.dtype(logits.dtype)
    itemsize = dtype.itemsize
    # Native sublane packing for the dtype: f32 -> 8, bf16 -> 16, int8/fp8 -> 32.
    sublane = {4: 8, 2: 16, 1: 32}.get(itemsize, 8)

    tile_target, default_vmem, n_cores = _device_defaults()
    if vmem_limit_bytes is None:
        vmem_limit_bytes = default_vmem

    # --- tile sizing (purely HBM-bandwidth-bound kernel) ---
    if block_cols is None:
        block_cols = min(C, 4096)
    if block_cols >= C:
        block_cols = C
    else:
        block_cols = max(128, (block_cols // 128) * 128)

    if block_rows is None:
        target_rows = tile_target // (itemsize * block_cols)
        block_rows = min(B, max(sublane, target_rows))
    if block_rows >= B:
        block_rows = B
    else:
        block_rows = max(sublane, (block_rows // sublane) * sublane)

    # Multi-TensorCore parts: make sure a "parallel" axis has >= 2 grid steps
    # so both cores get work, even for single-tile problems.
    if n_cores >= 2 and pl.cdiv(B, block_rows) == 1 and pl.cdiv(C, block_cols) == 1:
        if B >= 2 * sublane:
            block_rows = ((B + 1) // 2 + sublane - 1) // sublane * sublane
        elif C >= 256:
            block_cols = ((C + 1) // 2 + 127) // 128 * 128

    grid = (pl.cdiv(B, block_rows), pl.cdiv(C, block_cols))

    kernel = functools.partial(_cosface_kernel, s=float(s), m=float(m),
                               block_cols=block_cols)
    labels2d = labels.astype(jnp.int32).reshape(B, 1)

    cost = pl.CostEstimate(
        flops=3 * B * C,
        transcendentals=0,
        bytes_accessed=2 * B * C * itemsize + B * 4)

    return pl.pallas_call(
        kernel,
        out_shape=jax.ShapeDtypeStruct((B, C), logits.dtype),
        grid_spec=pltpu.PrefetchScalarGridSpec(
            num_scalar_prefetch=0,
            grid=grid,
            in_specs=[
                pl.BlockSpec((block_rows, 1), lambda i, j: (i, 0)),
                pl.BlockSpec((block_rows, block_cols), lambda i, j: (i, j)),
            ],
            out_specs=pl.BlockSpec((block_rows, block_cols), lambda i, j: (i, j)),
        ),
        input_output_aliases={1: 0},   # logits -> output (in-place when donated)
        compiler_params=pltpu.CompilerParams(
            dimension_semantics=("parallel", "parallel"),
            vmem_limit_bytes=vmem_limit_bytes),
        cost_estimate=cost,
    )(labels2d, logits)


def _reference(logits, labels, *, s, m):
    """Pure-JAX reference mirroring the PyTorch CosFace.forward."""
    B, C = logits.shape
    valid = labels != -1
    onehot = (jnp.arange(C)[None, :] == labels[:, None]) & valid[:, None]
    return jnp.where(onehot, logits - m, logits) * s


if __name__ == "__main__":
    S, M = 64.0, 0.4
    key = jax.random.PRNGKey(0)
    k1, k2, k3, k4, k5, k6 = jax.random.split(key, 6)

    # Case 1: small single-tile case (cosine logits in [-1, 1]), eager call.
    B, C = 8, 128
    logits = jax.random.uniform(k1, (B, C), jnp.float32, minval=-1.0, maxval=1.0)
    labels = jax.random.randint(k2, (B,), 0, C, dtype=jnp.int32)
    labels = labels.at[3].set(-1)                  # one ignored row
    ref = _reference(logits, labels, s=S, m=M)
    out = jax.block_until_ready(cosface(logits, labels, s=S, m=M))
    assert jnp.allclose(out, ref, atol=1e-5, rtol=1e-5), "mismatch (single tile)"

    # Case 2: multi-tile case exercising the 2-D grid / local column offsets.
    B2, C2 = 16, 256
    logits2 = jax.random.uniform(k3, (B2, C2), jnp.float32, minval=-1.0, maxval=1.0)
    labels2 = jax.random.randint(k4, (B2,), 0, C2, dtype=jnp.int32)
    labels2 = labels2.at[0].set(-1)
    ref2 = _reference(logits2, labels2, s=S, m=M)
    out2 = jax.block_until_ready(
        cosface(logits2, labels2, s=S, m=M, block_rows=8, block_cols=128))
    assert jnp.allclose(out2, ref2, atol=1e-5, rtol=1e-5), "mismatch (2-D grid)"

    # Case 3: jitted + donated logits so the input_output_aliases benefit is
    # real (no defensive copy).  Reference is computed before donation.
    B3, C3 = 16, 128
    logits3 = jax.random.uniform(k5, (B3, C3), jnp.float32, minval=-1.0, maxval=1.0)
    labels3 = jax.random.randint(k6, (B3,), 0, C3, dtype=jnp.int32)
    ref3 = _reference(logits3, labels3, s=S, m=M)
    cosface_donated = jax.jit(functools.partial(cosface, s=S, m=M),
                              donate_argnums=0)
    out3 = jax.block_until_ready(cosface_donated(logits3, labels3))
    del logits3  # donated: do not reuse
    assert jnp.allclose(out3, ref3, atol=1e-5, rtol=1e-5), "mismatch (donated)"

    print("KERNEL_OK")
</pallas_src>

<mosaic_0001>
module attributes {stable_mosaic.version = 11 : i64} {
  func.func @_cosface_kernel(%arg0: i32, %arg1: i32, %arg2: memref<8x1xi32, #tpu.memory_space<vmem>>, %arg3: memref<8x128xf32, #tpu.memory_space<vmem>>, %arg4: memref<8x128xf32, #tpu.memory_space<vmem>>) attributes {dimension_semantics = [#tpu.dimension_semantics<parallel>, #tpu.dimension_semantics<parallel>], iteration_bounds = array<i64: 1, 1>, scalar_prefetch = 0 : i64, scratch_operands = 0 : i64, tpu.core_type = #tpu.core_type<tc>, window_params = [{transform_indices = @transform_0, window_bounds = array<i64: 8, 1>}, {transform_indices = @transform_1, window_bounds = array<i64: 8, 128>}, {transform_indices = @transform_2, window_bounds = array<i64: 8, 128>}]} {
    %c0 = arith.constant 0 : index
    %c0_0 = arith.constant 0 : index
    %0 = vector.load %arg3[%c0, %c0_0] : memref<8x128xf32, #tpu.memory_space<vmem>>, vector<8x128xf32>
    %c0_1 = arith.constant 0 : index
    %c0_2 = arith.constant 0 : index
    %1 = vector.load %arg2[%c0_1, %c0_2] : memref<8x1xi32, #tpu.memory_space<vmem>>, vector<8x1xi32>
    %c128_i32 = arith.constant 128 : i32
    %2 = arith.muli %arg1, %c128_i32 : i32
    %3 = vector.broadcast %2 : i32 to vector<8x1xi32>
    %4 = arith.subi %1, %3 : vector<8x1xi32>
    %5 = tpu.iota {dimensions = array<i32: 1>} : vector<1x128xi32>
    %6 = vector.broadcast %4 : vector<8x1xi32> to vector<8x128xi32>
    %7 = vector.broadcast %5 : vector<1x128xi32> to vector<8x128xi32>
    %8 = arith.cmpi eq, %6, %7 : vector<8x128xi32>
    %cst = arith.constant 4.000000e-01 : f32
    %9 = vector.broadcast %cst : f32 to vector<8x128xf32>
    %10 = arith.subf %0, %9 : vector<8x128xf32>
    %11 = arith.select %8, %10, %0 : vector<8x128xi1>, vector<8x128xf32>
    %cst_3 = arith.constant 6.400000e+01 : f32
    %12 = vector.broadcast %cst_3 : f32 to vector<8x128xf32>
    %13 = arith.mulf %11, %12 : vector<8x128xf32>
    %c0_4 = arith.constant 0 : index
    %c0_5 = arith.constant 0 : index
    %14 = vector.load %arg4[%c0_4, %c0_5] : memref<8x128xf32, #tpu.memory_space<vmem>>, vector<8x128xf32>
    tpu.vector_store %arg4[%c0_4, %c0_5], %13 {strides = array<i32>} : memref<8x128xf32, #tpu.memory_space<vmem>>, vector<8x128xf32>,
    return
  }
  func.func @transform_0(%arg0: i32, %arg1: i32) -> (i32, i32) {
    %c0_i32 = arith.constant 0 : i32
    %c0_i32_0 = arith.constant 0 : i32
    return %arg0, %c0_i32 : i32, i32
  }
  func.func @transform_1(%arg0: i32, %arg1: i32) -> (i32, i32) {
    %c0_i32 = arith.constant 0 : i32
    return %arg0, %arg1 : i32, i32
  }
  func.func @transform_2(%arg0: i32, %arg1: i32) -> (i32, i32) {
    %c0_i32 = arith.constant 0 : i32
    return %arg0, %arg1 : i32, i32
  }
}

</mosaic_0001>

<llo_original>
// kernel: tpu_custom_call.1
$region0: #{tpu_custom_call.1}
  #allocation0 [shape = 'u32[]', space=smem, size = 0x4, offset = 0x4, fixed_abs, tag = 'smem constant byte address 0x4 - core index']
  #allocation1 [shape = 'u32[144,128]{1,0:T(1,128)}', space=vmem, size = 0x12000, scoped, tag = 'internal scratch']
  %s0 = inlined_call_operand.vmem [shape: s32[8,1], index: 0, kind: input, shape index: {}]
  %s1 = inlined_call_operand.hbm [shape: f32[8,128], index: 1, kind: input, shape index: {}, may-alias: {1,2}]
  %s2 = inlined_call_operand.hbm [shape: f32[8,128], index: 2, kind: output, shape index: {}, may-alias: {1,2}]
  %s3 = sld [smem:[#allocation0]]
  $region22: #{tpu_custom_call.1} parent=0
    _
  %s5 = ssub.s32 1, %s3
  %s6 = scalar_select 0, %s5, %s3
  $region1: #{tpu_custom_call.1} parent=0
    #allocation2 [shape = 'u8[4096]{0}', space=vmem, size = 0x1000, scoped, tag = 'input window, operand 1, single buffered']
    #allocation3 [shape = 's32[1]{0}', space=sflag, size = 0x4, scoped, tag = 'scoped memory for tpu_custom_call.1']
    #allocation4 [shape = 's32[1]{0}', space=sflag, size = 0x4, scoped, tag = 'scoped memory for tpu_custom_call.1']
    #allocation5 [shape = 'u8[4096]{0}', space=vmem, size = 0x1000, scoped, tag = 'output window, operand 0, single buffered']
    %7 = vsyncpa [#allocation3], 0
    %8 = vsyncpa [#allocation4], 0
    // Predicated region
    $region2: #{tpu_custom_call.1} parent=1 // pred_check
      _
    $region3: #{tpu_custom_call.1} parent=1 // pred_check_branch
      %10 = sbr.rel (0) target = $region5
    $region4: #{tpu_custom_call.1} parent=1 // pred_region
      _
    $region5: #{tpu_custom_call.1} parent=1 // pred_fallthru
      _
    // Predicated region
    $region6: #{tpu_custom_call.1} parent=1 // pred_check
      _
    $region7: #{tpu_custom_call.1} parent=1 // pred_check_branch
      %12 = sbr.rel (0) target = $region9
    $region8: #{tpu_custom_call.1} parent=1 // pred_region
      %s14 = ssub.s32 128, 128
      %15 = vsyncadd [#allocation3], %s14
      %s17 = sshll.u32 [#allocation2], 4
      %s18 = int_to_ptr.vmem [resolvable:$true] %s17
      %20 = dma.hbm_to_vmem [thread:$0]  %s1, 128, %s18, [#allocation3]
    $region9: #{tpu_custom_call.1} parent=1 // pred_fallthru
      _
    // Predicated region
    $region10: #{tpu_custom_call.1} parent=1 // pred_check
      _
    $region11: #{tpu_custom_call.1} parent=1 // pred_check_branch
      %22 = sbr.rel (0) target = $region13
    $region12: #{tpu_custom_call.1} parent=1 // pred_region
      %23 = dma.done [#allocation3], 128
    $region13: #{tpu_custom_call.1} parent=1 // pred_fallthru
      _
    %v24 = vld [vmem:[#allocation2] sm:$0xff]
    %v25 = vld [vmem:[%s0] sm:$0xff]
    %s26 = smul.u32 0, 128
    %v27 = vstv %s26
    %v28 = vsub.s32 %v25, %v27
    %v29 = vlaneseq
    %v30 = vand.u32 %v29, 127
    %31 = vset.pattern.permute.xlu0 0
    %32 = vperm.xlu0 %31, %v28
    %v33 = vpop.permute.xlu0 %32
    %vm34 = vcmp.eq.s32.totalorder %v33, %v30
    %v35 = vsub.f32 %v24, 0.4
    %v36 = vsel %vm34, %v35, %v24
    %v37 = vmul.f32 %v36, 64.0
    %38 = vst [vmem:[#allocation5] sm:$0xff] %v37
    // Predicated region
    $region14: #{tpu_custom_call.1} parent=1 // pred_check
      _
    $region15: #{tpu_custom_call.1} parent=1 // pred_check_branch
      %40 = sbr.rel (0) target = $region17
    $region16: #{tpu_custom_call.1} parent=1 // pred_region
      %s42 = ssub.s32 128, 128
      %43 = vsyncadd [#allocation4], %s42
      %s45 = sshll.u32 [#allocation5], 4
      %s46 = int_to_ptr.vmem [resolvable:$true] %s45
      %48 = dma.vmem_to_hbm [thread:$0]  %s46, 128, %s2, [#allocation4]
    $region17: #{tpu_custom_call.1} parent=1 // pred_fallthru
      _
    // Predicated region
    $region18: #{tpu_custom_call.1} parent=1 // pred_check
      _
    $region19: #{tpu_custom_call.1} parent=1 // pred_check_branch
      %50 = sbr.rel (0) target = $region21
    $region20: #{tpu_custom_call.1} parent=1 // pred_region
      %51 = dma.done [#allocation4], 128
    $region21: #{tpu_custom_call.1} parent=1 // pred_fallthru
      _
    %52 = vsyncpa [#allocation3], 1
    %53 = vsyncpa [#allocation4], 1

</llo_original>
